<compile_context>
chip_gen: v7x
topology: tpu7x:2x2x1
jax: 0.10.0
libtpu: 0.0.40
codegen_flags: <defaults>
</compile_context>

<pallas_src>
import jax
import jax.numpy as jnp
from jax.experimental import pallas as pl
from jax.experimental.pallas import tpu as pltpu


def _round_up(x, m):
    return ((x + m - 1) // m) * m


def _cdiv(a, b):
    return (a + b - 1) // b


# Tunables for the tile-size heuristic.
_TARGET_STEP_BYTES = 2 * 1024 * 1024    # >= ~2 MiB of HBM traffic per grid step
_VMEM_BLOCK_BUDGET = 20 * 1024 * 1024   # double-buffered block footprint cap
_VMEM_LIMIT_BYTES = 32 * 1024 * 1024    # explicit scoped-VMEM limit (v5e default=16MiB)


# ---------------------------------------------------------------------------
# Kernel body: one MXU matmul per edge tile.
#   x_ref   : (tm, 2F)  gathered+concatenated edge features (bf16 or f32)
#   w_ref   : (2F, C)   transposed Linear weight (same dtype as x)
#   b_ref   : (1, C)    bias, f32
#   out_ref : (tm, C)   f32 edge scores
# ---------------------------------------------------------------------------
def _mlp_predictor_kernel(x_ref, w_ref, b_ref, out_ref):
    acc = jnp.dot(x_ref[...], w_ref[...], preferred_element_type=jnp.float32)
    out_ref[...] = (acc + b_ref[...]).astype(out_ref.dtype)


def prepare_linear_params(weight, bias, *, input_dtype=jnp.bfloat16):
    """Hoistable per-module prep: PyTorch (C, 2F) Linear -> ((2F, C), (1, C))."""
    C = int(weight.shape[0])
    w_t = weight.T.astype(input_dtype)             # (2F, C): rows = [src half | dst half]
    b2d = bias.reshape(1, C).astype(jnp.float32)   # (1, C)
    return w_t, b2d


def _pick_edge_tile(num_edges, two_f, C, in_bytes):
    """Edge-tile rows per grid step: overhead-amortizing, VMEM-budgeted."""
    # HBM bytes moved per edge row (input read + output write).
    hbm_per_row = two_f * in_bytes + C * 4
    tm = _cdiv(_TARGET_STEP_BYTES, hbm_per_row)
    # VMEM footprint per row: lane-padded to 128 and double-buffered
    # (input block + output block).
    vmem_per_row = (2 * _round_up(two_f, 128) * in_bytes
                    + 2 * _round_up(C, 128) * 4)
    tm = min(tm, _VMEM_BLOCK_BUDGET // vmem_per_row)
    # Never bigger than the (16-row padded) edge count.
    tm = min(tm, _round_up(num_edges, 16))
    # Sublane packing: multiple of 16 covers both bf16 and f32 blocks.
    return max(16, _round_up(tm, 16))


def mlp_predictor_scores(h, src, dst, weight, bias, *, tm=None,
                         input_dtype=jnp.bfloat16):
    """Edge scores = Linear(concat(h[src], h[dst])).

    h:      [num_nodes, F] float32 node features
    src:    [num_edges]    int32 source node ids
    dst:    [num_edges]    int32 destination node ids
    weight: [C, 2F]        float32 (PyTorch nn.Linear layout)
    bias:   [C]            float32
    returns [num_edges, C] float32
    """
    num_edges = int(src.shape[0])
    F_dim = int(h.shape[1])
    C = int(weight.shape[0])
    two_f = 2 * F_dim
    in_bytes = jnp.dtype(input_dtype).itemsize

    # Glue: the data-dependent edge gather stays in XLA, but as a single
    # fused gather+concat producing ONE (E, 2F) stream (one DMA stream with
    # 2F-wide rows into the kernel instead of two F-wide ones).
    h_c = h.astype(input_dtype)
    x = jnp.concatenate(
        [jnp.take(h_c, src, axis=0), jnp.take(h_c, dst, axis=0)], axis=1)

    w_t, b2d = prepare_linear_params(weight, bias, input_dtype=input_dtype)

    if tm is None:
        tm_eff = _pick_edge_tile(num_edges, two_f, C, in_bytes)
    else:
        tm_eff = max(16, _round_up(min(tm, _round_up(num_edges, 16)), 16))
    grid = (_cdiv(num_edges, tm_eff),)

    cost = pl.CostEstimate(
        flops=2 * num_edges * two_f * C,
        transcendentals=0,
        bytes_accessed=num_edges * (two_f * in_bytes + C * 4)
        + two_f * C * in_bytes + C * 4,
    )

    out = pl.pallas_call(
        _mlp_predictor_kernel,
        out_shape=jax.ShapeDtypeStruct((num_edges, C), jnp.float32),
        grid_spec=pltpu.PrefetchScalarGridSpec(
            num_scalar_prefetch=0,
            grid=grid,
            in_specs=[
                pl.BlockSpec((tm_eff, two_f), lambda i: (i, 0)),  # edge feats
                pl.BlockSpec((two_f, C), lambda i: (0, 0)),       # weight
                pl.BlockSpec((1, C), lambda i: (0, 0)),           # bias
            ],
            out_specs=pl.BlockSpec((tm_eff, C), lambda i: (i, 0)),
        ),
        compiler_params=pltpu.CompilerParams(
            dimension_semantics=("parallel",),
            vmem_limit_bytes=_VMEM_LIMIT_BYTES,
        ),
        cost_estimate=cost,
    )(x, w_t, b2d)

    return out


if __name__ == "__main__":
    key = jax.random.PRNGKey(0)
    k_h, k_w, k_b, k_src, k_dst = jax.random.split(key, 5)

    num_nodes = 24
    in_features = 32
    out_classes = 8
    num_edges = 208

    h = jax.random.normal(k_h, (num_nodes, in_features), dtype=jnp.float32)
    # Deterministic "Linear" parameters (synthetic, not a checkpoint).
    weight = jax.random.normal(
        k_w, (out_classes, 2 * in_features), dtype=jnp.float32) * 0.1
    bias = jax.random.normal(k_b, (out_classes,), dtype=jnp.float32) * 0.1
    src = jax.random.randint(k_src, (num_edges,), 0, num_nodes, dtype=jnp.int32)
    dst = jax.random.randint(k_dst, (num_edges,), 0, num_nodes, dtype=jnp.int32)

    # Pure-JAX reference (mirrors the PyTorch forward exactly).
    ref = jnp.concatenate([h[src], h[dst]], axis=1) @ weight.T + bias

    # bf16 input path (default, auto tile): relaxed tolerance for bf16 rounding.
    scores_bf16 = mlp_predictor_scores(h, src, dst, weight, bias)
    scores_bf16 = jax.block_until_ready(scores_bf16)
    assert scores_bf16.shape == (num_edges, out_classes)
    assert jnp.allclose(scores_bf16, ref, atol=5e-2, rtol=5e-2), \
        "bf16-path mismatch vs reference"

    # f32 input path with a forced small tile (exercises the multi-step grid
    # and the partial trailing block): tight tolerance.
    scores_f32 = mlp_predictor_scores(h, src, dst, weight, bias,
                                      tm=64, input_dtype=jnp.float32)
    scores_f32 = jax.block_until_ready(scores_f32)
    assert jnp.allclose(scores_f32, ref, atol=1e-5, rtol=1e-5), \
        "f32-path mismatch vs reference"

    print("KERNEL_OK")
</pallas_src>

<mosaic_0001>
module attributes {stable_mosaic.version = 11 : i64} {
  func.func @_mlp_predictor_kernel(%arg0: i32, %arg1: memref<208x64xbf16, #tpu.memory_space<vmem>>, %arg2: memref<64x8xbf16, #tpu.memory_space<vmem>>, %arg3: memref<1x8xf32, #tpu.memory_space<vmem>>, %arg4: memref<208x8xf32, #tpu.memory_space<vmem>>) attributes {dimension_semantics = [#tpu.dimension_semantics<parallel>], iteration_bounds = array<i64: 1>, scalar_prefetch = 0 : i64, scratch_operands = 0 : i64, tpu.core_type = #tpu.core_type<tc>, window_params = [{transform_indices = @transform_0, window_bounds = array<i64: 208, 64>}, {pipeline_mode = #tpu.pipeline_mode<synchronous>, transform_indices = @transform_1, window_bounds = array<i64: 64, 8>}, {pipeline_mode = #tpu.pipeline_mode<synchronous>, transform_indices = @transform_2, window_bounds = array<i64: 1, 8>}, {transform_indices = @transform_3, window_bounds = array<i64: 208, 8>}]} {
    %c0 = arith.constant 0 : index
    %c0_0 = arith.constant 0 : index
    %0 = vector.load %arg1[%c0, %c0_0] : memref<208x64xbf16, #tpu.memory_space<vmem>>, vector<208x64xbf16>
    %c0_1 = arith.constant 0 : index
    %c0_2 = arith.constant 0 : index
    %1 = vector.load %arg2[%c0_1, %c0_2] : memref<64x8xbf16, #tpu.memory_space<vmem>>, vector<64x8xbf16>
    %cst = arith.constant dense<0.000000e+00> : vector<208x8xf32>
    %2 = tpu.matmul %0, %1, %cst {dimension_numbers = #tpu.dot_dimension_numbers<[1], [0], [0], [1], [0, 0, 1, 1], [], []>} : vector<208x64xbf16>, vector<64x8xbf16>, vector<208x8xf32> -> vector<208x8xf32>
    %c0_3 = arith.constant 0 : index
    %c0_4 = arith.constant 0 : index
    %3 = vector.load %arg3[%c0_3, %c0_4] : memref<1x8xf32, #tpu.memory_space<vmem>>, vector<1x8xf32>
    %4 = vector.broadcast %3 : vector<1x8xf32> to vector<208x8xf32>
    %5 = arith.addf %2, %4 : vector<208x8xf32>
    %c0_5 = arith.constant 0 : index
    %c0_6 = arith.constant 0 : index
    %6 = vector.load %arg4[%c0_5, %c0_6] : memref<208x8xf32, #tpu.memory_space<vmem>>, vector<208x8xf32>
    tpu.vector_store %arg4[%c0_5, %c0_6], %5 {strides = array<i32>} : memref<208x8xf32, #tpu.memory_space<vmem>>, vector<208x8xf32>,
    return
  }
  func.func @transform_0(%arg0: i32) -> (i32, i32) {
    %c0_i32 = arith.constant 0 : i32
    %c0_i32_0 = arith.constant 0 : i32
    return %arg0, %c0_i32 : i32, i32
  }
  func.func @transform_1(%arg0: i32) -> (i32, i32) {
    %c0_i32 = arith.constant 0 : i32
    %c0_i32_0 = arith.constant 0 : i32
    %c0_i32_1 = arith.constant 0 : i32
    return %c0_i32, %c0_i32_0 : i32, i32
  }
  func.func @transform_2(%arg0: i32) -> (i32, i32) {
    %c0_i32 = arith.constant 0 : i32
    %c0_i32_0 = arith.constant 0 : i32
    %c0_i32_1 = arith.constant 0 : i32
    return %c0_i32, %c0_i32_0 : i32, i32
  }
  func.func @transform_3(%arg0: i32) -> (i32, i32) {
    %c0_i32 = arith.constant 0 : i32
    %c0_i32_0 = arith.constant 0 : i32
    return %arg0, %c0_i32 : i32, i32
  }
}

</mosaic_0001>

<llo_original>
// kernel: tpu_custom_call.1
$region0: #{tpu_custom_call.1}
  #allocation0 [shape = 'u32[]', space=smem, size = 0x4, offset = 0x4, fixed_abs, tag = 'smem constant byte address 0x4 - core index']
  #allocation1 [shape = 'u32[144,128]{1,0:T(1,128)}', space=vmem, size = 0x12000, scoped, tag = 'internal scratch']
  %s0 = inlined_call_operand.vmem [shape: bf16[208,64], index: 0, kind: input, shape index: {}]
  %s1 = inlined_call_operand.vmem [shape: bf16[64,8], index: 1, kind: input, shape index: {}]
  %s2 = inlined_call_operand.vmem [shape: f32[1,8], index: 2, kind: input, shape index: {}]
  %s3 = inlined_call_operand.vmem [shape: f32[208,8], index: 3, kind: output, shape index: {}]
  %s4 = sld [smem:[#allocation0]]
  $region22: #{tpu_custom_call.1} parent=0
    _
  %s6 = ssub.s32 1, %s4
  %s7 = scalar_select 0, %s6, %s4
  // Predicated region
  $region2: #{tpu_custom_call.1} parent=0 // pred_check
    _
  $region3: #{tpu_custom_call.1} parent=0 // pred_check_branch
    %9 = sbr.rel (0) target = $region5
  $region4: #{tpu_custom_call.1} parent=0 // pred_region
    _
  $region5: #{tpu_custom_call.1} parent=0 // pred_fallthru
    _
  // Predicated region
  $region6: #{tpu_custom_call.1} parent=0 // pred_check
    _
  $region7: #{tpu_custom_call.1} parent=0 // pred_check_branch
    %11 = sbr.rel (0) target = $region9
  $region8: #{tpu_custom_call.1} parent=0 // pred_region
    _
  $region9: #{tpu_custom_call.1} parent=0 // pred_fallthru
    _
  // Predicated region
  $region10: #{tpu_custom_call.1} parent=0 // pred_check
    _
  $region11: #{tpu_custom_call.1} parent=0 // pred_check_branch
    %13 = sbr.rel (0) target = $region13
  $region12: #{tpu_custom_call.1} parent=0 // pred_region
    _
  $region13: #{tpu_custom_call.1} parent=0 // pred_fallthru
    _
  %v15 = vld [vmem:[%s0] sm:$0xf]
  %v16 = vld [vmem:[%s0 + $0x4] sm:$0xf]
  %v17 = vld [vmem:[%s0 + $0x8] sm:$0xf]
  %v18 = vld [vmem:[%s0 + $0xc] sm:$0xf]
  %v19 = vld [vmem:[%s0 + $0x10] sm:$0xf]
  %v20 = vld [vmem:[%s0 + $0x14] sm:$0xf]
  %v21 = vld [vmem:[%s0 + $0x18] sm:$0xf]
  %v22 = vld [vmem:[%s0 + $0x1c] sm:$0xf]
  %v23 = vld [vmem:[%s0 + $0x20] sm:$0xf]
  %v24 = vld [vmem:[%s0 + $0x24] sm:$0xf]
  %v25 = vld [vmem:[%s0 + $0x28] sm:$0xf]
  %v26 = vld [vmem:[%s0 + $0x2c] sm:$0xf]
  %v27 = vld [vmem:[%s0 + $0x30] sm:$0xf]
  %v28 = vld [vmem:[%s0 + $0x34] sm:$0xf]
  %v29 = vld [vmem:[%s0 + $0x38] sm:$0xf]
  %v30 = vld [vmem:[%s0 + $0x3c] sm:$0xf]
  %v31 = vld [vmem:[%s0 + $0x40] sm:$0xf]
  %v32 = vld [vmem:[%s0 + $0x44] sm:$0xf]
  %v33 = vld [vmem:[%s0 + $0x48] sm:$0xf]
  %v34 = vld [vmem:[%s0 + $0x4c] sm:$0xf]
  %v35 = vld [vmem:[%s0 + $0x50] sm:$0xf]
  %v36 = vld [vmem:[%s0 + $0x54] sm:$0xf]
  %v37 = vld [vmem:[%s0 + $0x58] sm:$0xf]
  %v38 = vld [vmem:[%s0 + $0x5c] sm:$0xf]
  %v39 = vld [vmem:[%s0 + $0x60] sm:$0xf]
  %v40 = vld [vmem:[%s0 + $0x64] sm:$0xf]
  %v41 = vld [vmem:[%s1] sm:$0xf]
  %v42 = vld [vmem:[%s1 + $0x4] sm:$0xf]
  %v43 = vld [vmem:[%s1 + $0x8] sm:$0xf]
  %v44 = vld [vmem:[%s1 + $0xc] sm:$0xf]
  %v45 = vld [vmem:[%s1 + $0x10] sm:$0xf]
  %v46 = vld [vmem:[%s1 + $0x14] sm:$0xf]
  %v47 = vld [vmem:[%s1 + $0x18] sm:$0xf]
  %v48 = vld [vmem:[%s1 + $0x1c] sm:$0xf]
  %v49 = vld [vmem:[%s2] sm:$0x1]
  %v51 = vlaneseq
  %v52 = vshrl.u32 %v51, 7
  %v53 = vsub.s32 0, %v52
  %v54 = vrot.slane %v49, %v53
  %v82 = vunpack.c.l.b16 %v15
  %v83 = vunpack.c.l.b16 %v16
  %v84 = vunpack.c.l.b16 %v17
  %v85 = vunpack.c.l.b16 %v18
  %v86 = vunpack.c.l.b16 %v19
  %v87 = vunpack.c.l.b16 %v20
  %v88 = vunpack.c.l.b16 %v21
  %v89 = vunpack.c.l.b16 %v22
  %v90 = vunpack.c.l.b16 %v23
  %v91 = vunpack.c.l.b16 %v24
  %v92 = vunpack.c.l.b16 %v25
  %v93 = vunpack.c.l.b16 %v26
  %v94 = vunpack.c.l.b16 %v27
  %v95 = vunpack.c.l.b16 %v28
  %v96 = vunpack.c.l.b16 %v29
  %v97 = vunpack.c.l.b16 %v30
  %v98 = vunpack.c.l.b16 %v31
  %v99 = vunpack.c.l.b16 %v32
  %v100 = vunpack.c.l.b16 %v33
  %v101 = vunpack.c.l.b16 %v34
  %v102 = vunpack.c.l.b16 %v35
  %v103 = vunpack.c.l.b16 %v36
  %v104 = vunpack.c.l.b16 %v37
  %v105 = vunpack.c.l.b16 %v38
  %v106 = vunpack.c.l.b16 %v39
  %v107 = vunpack.c.l.b16 %v40
  %v108 = vpack.c.b16 %v83, %v82
  %v109 = vpack.c.b16 %v85, %v84
  %v110 = vpack.c.b16 %v87, %v86
  %v111 = vpack.c.b16 %v89, %v88
  %v112 = vpack.c.b16 %v91, %v90
  %v113 = vpack.c.b16 %v93, %v92
  %v114 = vpack.c.b16 %v95, %v94
  %v115 = vpack.c.b16 %v97, %v96
  %v116 = vpack.c.b16 %v99, %v98
  %v117 = vpack.c.b16 %v101, %v100
  %v118 = vpack.c.b16 %v103, %v102
  %v119 = vpack.c.b16 %v105, %v104
  %v120 = vpack.c.b16 %v107, %v106
  %v129 = vunpack.c.l.b16 %v41
  %v130 = vunpack.c.l.b16 %v42
  %v131 = vunpack.c.l.b16 %v43
  %v132 = vunpack.c.l.b16 %v44
  %v133 = vunpack.c.l.b16 %v45
  %v134 = vunpack.c.l.b16 %v46
  %v135 = vunpack.c.l.b16 %v47
  %v136 = vunpack.c.l.b16 %v48
  %v137 = vpack.c.b16 %v130, %v129
  %v138 = vpack.c.b16 %v132, %v131
  %v139 = vpack.c.b16 %v134, %v133
  %v140 = vpack.c.b16 %v136, %v135
  %vm145 = vcmask 523264
  %v147 = vsel %vm145, %v108, 0
  %v150 = vsel %vm145, %v109, 0
  %v153 = vsel %vm145, %v110, 0
  %v156 = vsel %vm145, %v111, 0
  %v159 = vsel %vm145, %v112, 0
  %v162 = vsel %vm145, %v113, 0
  %v165 = vsel %vm145, %v114, 0
  %v168 = vsel %vm145, %v115, 0
  %v171 = vsel %vm145, %v116, 0
  %v174 = vsel %vm145, %v117, 0
  %v177 = vsel %vm145, %v118, 0
  %v180 = vsel %vm145, %v119, 0
  %v183 = vsel %vm145, %v120, 0
  %185 = vmatprep.subr.bf16.mxu0 0
  %186 = vmatpush1.bf16.msra.mxu0 %v137
  %187 = vmatprep.subr.bf16.mxu0 0
  %188 = vmatpush1.bf16.msra.mxu0 %v138
  %189 = vmatprep.subr.bf16.mxu0 0
  %190 = vmatpush1.bf16.msra.mxu0 %v139
  %191 = vmatprep.subr.bf16.mxu0 0
  %192 = vmatpush1.bf16.msra.mxu0 %v140
  %193 = vmatprep.subr.bf16.mxu0 0
  %194 = vmatpush1.bf16.msra.mxu0 0
  %195 = vmatprep.subr.bf16.mxu0 0
  %196 = vmatpush1.bf16.msra.mxu0 0
  %197 = vmatprep.subr.bf16.mxu0 0
  %198 = vmatpush1.bf16.msra.mxu0 0
  %199 = vmatprep.subr.bf16.mxu0 0
  %200 = vmatpush1.bf16.msra.mxu0 0
  %201 = vmatprep.subr.bf16.mxu0 0
  %202 = vmatpush1.bf16.msra.mxu0 0
  %203 = vmatprep.subr.bf16.mxu0 0
  %204 = vmatpush1.bf16.msra.mxu0 0
  %205 = vmatprep.subr.bf16.mxu0 0
  %206 = vmatpush1.bf16.msra.mxu0 0
  %207 = vmatprep.subr.bf16.mxu0 0
  %208 = vmatpush1.bf16.msra.mxu0 0
  %209 = vmatprep.subr.bf16.mxu0 0
  %210 = vmatpush1.bf16.msra.mxu0 0
  %211 = vmatprep.subr.bf16.mxu0 0
  %212 = vmatpush1.bf16.msra.mxu0 0
  %213 = vmatprep.subr.bf16.mxu0 0
  %214 = vmatpush1.bf16.msra.mxu0 0
  %215 = vmatprep.subr.bf16.mxu0 0
  %216 = vmatpush1.bf16.msra.mxu0 0
  %217 = vmatprep.mubr.bf16.mxu0 0
  %218 = vmatmul.mubr.bf16.gmra.mrb[0].mxu0 %v147
  %v219 = vpop.f32.mrb[0].mxu0
  %v220 = vadd.f32 %v54, %v219
  %v221 = vpop.f32.mrb[0].mxu0
  %v222 = vpop.f32.mrb[0].mxu0
  %v223 = vadd.f32 %v54, %v222
  %v224 = vpop.f32.mrb[0].mxu0
  %225 = vmatprep.mubr.bf16.mxu0 0
  %226 = vmatmul.mubr.bf16.gmra.mrb[0].mxu0 %v150
  %v227 = vpop.f32.mrb[0].mxu0
  %v228 = vadd.f32 %v54, %v227
  %v229 = vpop.f32.mrb[0].mxu0
  %v230 = vpop.f32.mrb[0].mxu0
  %v231 = vadd.f32 %v54, %v230
  %v232 = vpop.f32.mrb[0].mxu0
  %233 = vmatprep.mubr.bf16.mxu0 0
  %234 = vmatmul.mubr.bf16.gmra.mrb[0].mxu0 %v153
  %v235 = vpop.f32.mrb[0].mxu0
  %v236 = vadd.f32 %v54, %v235
  %v237 = vpop.f32.mrb[0].mxu0
  %v238 = vpop.f32.mrb[0].mxu0
  %v239 = vadd.f32 %v54, %v238
  %v240 = vpop.f32.mrb[0].mxu0
  %241 = vmatprep.mubr.bf16.mxu0 0
  %242 = vmatmul.mubr.bf16.gmra.mrb[0].mxu0 %v156
  %v243 = vpop.f32.mrb[0].mxu0
  %v244 = vadd.f32 %v54, %v243
  %v245 = vpop.f32.mrb[0].mxu0
  %v246 = vpop.f32.mrb[0].mxu0
  %v247 = vadd.f32 %v54, %v246
  %v248 = vpop.f32.mrb[0].mxu0
  %249 = vmatprep.mubr.bf16.mxu0 0
  %250 = vmatmul.mubr.bf16.gmra.mrb[0].mxu0 %v159
  %v251 = vpop.f32.mrb[0].mxu0
  %v252 = vadd.f32 %v54, %v251
  %v253 = vpop.f32.mrb[0].mxu0
  %v254 = vpop.f32.mrb[0].mxu0
  %v255 = vadd.f32 %v54, %v254
  %v256 = vpop.f32.mrb[0].mxu0
  %257 = vmatprep.mubr.bf16.mxu0 0
  %258 = vmatmul.mubr.bf16.gmra.mrb[0].mxu0 %v162
  %v259 = vpop.f32.mrb[0].mxu0
  %v260 = vadd.f32 %v54, %v259
  %v261 = vpop.f32.mrb[0].mxu0
  %v262 = vpop.f32.mrb[0].mxu0
  %v263 = vadd.f32 %v54, %v262
  %v264 = vpop.f32.mrb[0].mxu0
  %265 = vmatprep.mubr.bf16.mxu0 0
  %266 = vmatmul.mubr.bf16.gmra.mrb[0].mxu0 %v165
  %v267 = vpop.f32.mrb[0].mxu0
  %v268 = vadd.f32 %v54, %v267
  %v269 = vpop.f32.mrb[0].mxu0
  %v270 = vpop.f32.mrb[0].mxu0
  %v271 = vadd.f32 %v54, %v270
  %v272 = vpop.f32.mrb[0].mxu0
  %273 = vmatprep.mubr.bf16.mxu0 0
  %274 = vmatmul.mubr.bf16.gmra.mrb[0].mxu0 %v168
  %v275 = vpop.f32.mrb[0].mxu0
  %v276 = vadd.f32 %v54, %v275
  %v277 = vpop.f32.mrb[0].mxu0
  %v278 = vpop.f32.mrb[0].mxu0
  %v279 = vadd.f32 %v54, %v278
  %v280 = vpop.f32.mrb[0].mxu0
  %281 = vmatprep.mubr.bf16.mxu0 0
  %282 = vmatmul.mubr.bf16.gmra.mrb[0].mxu0 %v171
  %v283 = vpop.f32.mrb[0].mxu0
  %v284 = vadd.f32 %v54, %v283
  %v285 = vpop.f32.mrb[0].mxu0
  %v286 = vpop.f32.mrb[0].mxu0
  %v287 = vadd.f32 %v54, %v286
  %v288 = vpop.f32.mrb[0].mxu0
  %289 = vmatprep.mubr.bf16.mxu0 0
  %290 = vmatmul.mubr.bf16.gmra.mrb[0].mxu0 %v174
  %v291 = vpop.f32.mrb[0].mxu0
  %v292 = vadd.f32 %v54, %v291
  %v293 = vpop.f32.mrb[0].mxu0
  %v294 = vpop.f32.mrb[0].mxu0
  %v295 = vadd.f32 %v54, %v294
  %v296 = vpop.f32.mrb[0].mxu0
  %297 = vmatprep.mubr.bf16.mxu0 0
  %298 = vmatmul.mubr.bf16.gmra.mrb[0].mxu0 %v177
  %v299 = vpop.f32.mrb[0].mxu0
  %v300 = vadd.f32 %v54, %v299
  %v301 = vpop.f32.mrb[0].mxu0
  %v302 = vpop.f32.mrb[0].mxu0
  %v303 = vadd.f32 %v54, %v302
  %v304 = vpop.f32.mrb[0].mxu0
  %305 = vmatprep.mubr.bf16.mxu0 0
  %306 = vmatmul.mubr.bf16.gmra.mrb[0].mxu0 %v180
  %v307 = vpop.f32.mrb[0].mxu0
  %v308 = vadd.f32 %v54, %v307
  %v309 = vpop.f32.mrb[0].mxu0
  %v310 = vpop.f32.mrb[0].mxu0
  %v311 = vadd.f32 %v54, %v310
  %v312 = vpop.f32.mrb[0].mxu0
  %313 = vmatprep.mubr.bf16.mxu0 0
  %314 = vmatmul.mubr.bf16.gmra.mrb[0].mxu0 %v183
  %v315 = vpop.f32.mrb[0].mxu0
  %v316 = vadd.f32 %v54, %v315
  %v317 = vpop.f32.mrb[0].mxu0
  %v318 = vpop.f32.mrb[0].mxu0
  %v319 = vadd.f32 %v54, %v318
  %v320 = vpop.f32.mrb[0].mxu0
  %321 = vdwg.mxu0
  %vm322 = vcmask 64512
  %323 = vst.msk [vmem:[%s3] sm:$0xff] %vm322, %v220
  %324 = vst.msk [vmem:[%s3 + $0x8] sm:$0xff] %vm322, %v223
  %325 = vst.msk [vmem:[%s3 + $0x10] sm:$0xff] %vm322, %v228
  %326 = vst.msk [vmem:[%s3 + $0x18] sm:$0xff] %vm322, %v231
  %327 = vst.msk [vmem:[%s3 + $0x20] sm:$0xff] %vm322, %v236
  %328 = vst.msk [vmem:[%s3 + $0x28] sm:$0xff] %vm322, %v239
  %329 = vst.msk [vmem:[%s3 + $0x30] sm:$0xff] %vm322, %v244
  %330 = vst.msk [vmem:[%s3 + $0x38] sm:$0xff] %vm322, %v247
  %331 = vst.msk [vmem:[%s3 + $0x40] sm:$0xff] %vm322, %v252
  %332 = vst.msk [vmem:[%s3 + $0x48] sm:$0xff] %vm322, %v255
  %333 = vst.msk [vmem:[%s3 + $0x50] sm:$0xff] %vm322, %v260
  %334 = vst.msk [vmem:[%s3 + $0x58] sm:$0xff] %vm322, %v263
  %335 = vst.msk [vmem:[%s3 + $0x60] sm:$0xff] %vm322, %v268
  %336 = vst.msk [vmem:[%s3 + $0x68] sm:$0xff] %vm322, %v271
  %337 = vst.msk [vmem:[%s3 + $0x70] sm:$0xff] %vm322, %v276
  %338 = vst.msk [vmem:[%s3 + $0x78] sm:$0xff] %vm322, %v279
  %339 = vst.msk [vmem:[%s3 + $0x80] sm:$0xff] %vm322, %v284
  %340 = vst.msk [vmem:[%s3 + $0x88] sm:$0xff] %vm322, %v287
  %341 = vst.msk [vmem:[%s3 + $0x90] sm:$0xff] %vm322, %v292
  %342 = vst.msk [vmem:[%s3 + $0x98] sm:$0xff] %vm322, %v295
  %343 = vst.msk [vmem:[%s3 + $0xa0] sm:$0xff] %vm322, %v300
  %344 = vst.msk [vmem:[%s3 + $0xa8] sm:$0xff] %vm322, %v303
  %345 = vst.msk [vmem:[%s3 + $0xb0] sm:$0xff] %vm322, %v308
  %346 = vst.msk [vmem:[%s3 + $0xb8] sm:$0xff] %vm322, %v311
  %347 = vst.msk [vmem:[%s3 + $0xc0] sm:$0xff] %vm322, %v316
  %348 = vst.msk [vmem:[%s3 + $0xc8] sm:$0xff] %vm322, %v319
  // Predicated region
  $region14: #{tpu_custom_call.1} parent=0 // pred_check
    _
  $region15: #{tpu_custom_call.1} parent=0 // pred_check_branch
    %350 = sbr.rel (0) target = $region17
  $region16: #{tpu_custom_call.1} parent=0 // pred_region
    _
  $region17: #{tpu_custom_call.1} parent=0 // pred_fallthru
    _
  // Predicated region
  $region18: #{tpu_custom_call.1} parent=0 // pred_check
    _
  $region19: #{tpu_custom_call.1} parent=0 // pred_check_branch
    %352 = sbr.rel (0) target = $region21
  $region20: #{tpu_custom_call.1} parent=0 // pred_region
    _
  $region21: #{tpu_custom_call.1} parent=0 // pred_fallthru
    _

</llo_original>
